<compile_context>
chip_gen: v6e
topology: v6e:2x2x1
jax: 0.10.0
libtpu: 0.0.40
codegen_flags: <defaults>
</compile_context>

<pallas_src>
import math

import jax
import jax.numpy as jnp
from jax.experimental import pallas as pl
from jax.experimental.pallas import tpu as pltpu

_LANES = 512          # multiple of 128 -> lane-dense, unmasked stores
_MAX_BLOCK_ROWS = 2048  # 2048 * 512 * 4B = 4 MiB f32 per output block


def _mix_u32(x):
    """splitmix32-style finalizer: decorrelates sequential counters."""
    x = x ^ (x >> jnp.uint32(16))
    x = x * jnp.uint32(0x7FEB352D)
    x = x ^ (x >> jnp.uint32(15))
    x = x * jnp.uint32(0x846CA68B)
    x = x ^ (x >> jnp.uint32(16))
    return x


def _randn_block_kernel(seed_ref, o_ref):
    """Fill one (block_rows, LANES) tile with N(0,1) samples.

    Each (u1, u2) uniform pair (one per element of the top half) produces two
    normals via the full Box-Muller transform; cos-branch goes to the top
    half of the block, sin-branch to the bottom half.
    """
    blk = pl.program_id(0)
    rows, lanes = o_ref.shape          # static block shape
    half = rows // 2                   # rows is a multiple of 16 -> half % 8 == 0

    # Global pair index (unique across the whole padded output).
    row_ids = jax.lax.broadcasted_iota(jnp.int32, (half, lanes), 0)
    col_ids = jax.lax.broadcasted_iota(jnp.int32, (half, lanes), 1)
    local = row_ids * jnp.int32(lanes) + col_ids
    ctr = (blk * jnp.int32(half * lanes) + local).astype(jnp.uint32)

    # Mix the base seed in multiplicatively so different seeds give
    # non-overlapping streams (no seed+offset collisions).
    seed_u = seed_ref[0].astype(jnp.uint32) * jnp.uint32(0x9E3779B9)
    key = ctr + seed_u

    bits1 = _mix_u32(key)
    bits2 = _mix_u32(key ^ jnp.uint32(0x85EBCA6B))

    # Top 24 bits -> uniforms.  u1 in (0, 1) (strictly > 0, log-safe),
    # u2 in [0, 1).
    inv24 = jnp.float32(1.0 / (1 << 24))
    u1 = ((bits1 >> jnp.uint32(8)).astype(jnp.int32).astype(jnp.float32)
          + jnp.float32(0.5)) * inv24
    u2 = (bits2 >> jnp.uint32(8)).astype(jnp.int32).astype(jnp.float32) * inv24

    # Full Box-Muller pair: 2 normals per (u1, u2).
    r = jnp.sqrt(jnp.float32(-2.0) * jnp.log(u1))
    theta = jnp.float32(2.0 * math.pi) * u2
    o_ref[0:half, :] = r * jnp.cos(theta)
    o_ref[half:rows, :] = r * jnp.sin(theta)


def mock_hf_forward(pixel_values: jax.Array, num_labels: int = 3, seed: int = 0):
    """Equivalent of MockHuggingFaceModel.forward: logits of shape
    (batch, num_labels, H, W), float32, iid N(0, 1)."""
    B = pixel_values.shape[0]
    H, W = pixel_values.shape[2], pixel_values.shape[3]
    total = B * num_labels * H * W

    # Flat lane-dense layout: (padded_rows, _LANES), 1-D grid over row blocks.
    rows = pl.cdiv(total, _LANES)
    block_rows = min(_MAX_BLOCK_ROWS, ((rows + 15) // 16) * 16)  # mult of 16
    grid_rows = pl.cdiv(rows, block_rows)
    padded_rows = grid_rows * block_rows

    seed_arr = jnp.array([seed], dtype=jnp.int32)

    flat = pl.pallas_call(
        _randn_block_kernel,
        out_shape=jax.ShapeDtypeStruct((padded_rows, _LANES), jnp.float32),
        grid_spec=pltpu.PrefetchScalarGridSpec(
            num_scalar_prefetch=1,          # seed lives in SMEM
            grid=(grid_rows,),
            in_specs=[],                    # pixel_values values are unused
            out_specs=pl.BlockSpec((block_rows, _LANES),
                                   lambda i, seed: (i, 0)),
        ),
        compiler_params=pltpu.CompilerParams(
            # Independent blocks -> shard across both TCs on v7x; no-op on
            # single-TC v5e/v6e.
            dimension_semantics=("parallel",),
        ),
    )(seed_arr)

    # Free layout plumbing back to NCHW.
    return flat.reshape(-1)[:total].reshape(B, num_labels, H, W)


class MockHuggingFaceModelPallas:
    """Thin Python wrapper mirroring the PyTorch module's interface."""

    def __init__(self, num_labels: int = 3, seed: int = 0):
        self.num_labels = num_labels
        self.seed = seed

    def forward(self, pixel_values: jax.Array):
        logits = mock_hf_forward(pixel_values, self.num_labels, self.seed)
        # Mimic the HF-style output object with a .logits attribute.
        return type("MockOutput", (), {"logits": logits})()


if __name__ == "__main__":
    key = jax.random.PRNGKey(0)
    # pixel_values: NCHW, small shapes (batch=2, channels=4, spatial=16)
    pixel_values = jax.random.normal(key, (2, 4, 16, 16), dtype=jnp.float32)

    model = MockHuggingFaceModelPallas(num_labels=3, seed=0)
    out = model.forward(pixel_values)
    logits = jax.block_until_ready(out.logits)

    assert logits.shape == (2, 3, 16, 16), logits.shape
    assert logits.dtype == jnp.float32
    assert bool(jnp.all(jnp.isfinite(logits)))
    # Loose distributional sanity (1536 samples of N(0,1)).
    mean = float(jnp.mean(logits))
    std = float(jnp.std(logits))
    assert abs(mean) < 0.25, mean
    assert 0.75 < std < 1.25, std
    print("KERNEL_OK")
</pallas_src>

<mosaic_0001>
module attributes {stable_mosaic.version = 11 : i64} {
  func.func @_randn_block_kernel(%arg0: i32, %arg1: memref<1xi32, #tpu.memory_space<smem>>, %arg2: memref<16x512xf32, #tpu.memory_space<vmem>>) attributes {dimension_semantics = [#tpu.dimension_semantics<parallel>], iteration_bounds = array<i64: 1>, scalar_prefetch = 1 : i64, scratch_operands = 0 : i64, tpu.core_type = #tpu.core_type<tc>, window_params = [{transform_indices = @transform_0, window_bounds = array<i64: 16, 512>}]} {
    %0 = tpu.iota {dimensions = array<i32: 0>} : vector<8x512xi32>
    %1 = tpu.iota {dimensions = array<i32: 1>} : vector<8x512xi32>
    %c512_i32 = arith.constant 512 : i32
    %2 = vector.broadcast %c512_i32 : i32 to vector<8x512xi32>
    %3 = arith.muli %0, %2 : vector<8x512xi32>
    %4 = arith.addi %3, %1 : vector<8x512xi32>
    %c4096_i32 = arith.constant 4096 : i32
    %5 = arith.muli %arg0, %c4096_i32 : i32
    %6 = vector.broadcast %5 : i32 to vector<8x512xi32>
    %7 = arith.addi %6, %4 : vector<8x512xi32>
    %c0 = arith.constant 0 : index
    %8 = memref.load %arg1[%c0] : memref<1xi32, #tpu.memory_space<smem>>
    %c-1640531527_i32 = arith.constant -1640531527 : i32
    %9 = arith.muli %8, %c-1640531527_i32 : i32
    %10 = vector.broadcast %9 : i32 to vector<8x512xi32>
    %11 = arith.addi %7, %10 : vector<8x512xi32>
    %c16_i32 = arith.constant 16 : i32
    %12 = vector.broadcast %c16_i32 : i32 to vector<8x512xi32>
    %13 = arith.shrui %11, %12 : vector<8x512xi32>
    %14 = arith.xori %11, %13 : vector<8x512xi32>
    %c2146121005_i32 = arith.constant 2146121005 : i32
    %15 = vector.broadcast %c2146121005_i32 : i32 to vector<8x512xi32>
    %16 = arith.muli %14, %15 : vector<8x512xi32>
    %c15_i32 = arith.constant 15 : i32
    %17 = vector.broadcast %c15_i32 : i32 to vector<8x512xi32>
    %18 = arith.shrui %16, %17 : vector<8x512xi32>
    %19 = arith.xori %16, %18 : vector<8x512xi32>
    %c-2073254261_i32 = arith.constant -2073254261 : i32
    %20 = vector.broadcast %c-2073254261_i32 : i32 to vector<8x512xi32>
    %21 = arith.muli %19, %20 : vector<8x512xi32>
    %c16_i32_0 = arith.constant 16 : i32
    %22 = vector.broadcast %c16_i32_0 : i32 to vector<8x512xi32>
    %23 = arith.shrui %21, %22 : vector<8x512xi32>
    %24 = arith.xori %21, %23 : vector<8x512xi32>
    %c-2048144789_i32 = arith.constant -2048144789 : i32
    %25 = vector.broadcast %c-2048144789_i32 : i32 to vector<8x512xi32>
    %26 = arith.xori %11, %25 : vector<8x512xi32>
    %c16_i32_1 = arith.constant 16 : i32
    %27 = vector.broadcast %c16_i32_1 : i32 to vector<8x512xi32>
    %28 = arith.shrui %26, %27 : vector<8x512xi32>
    %29 = arith.xori %26, %28 : vector<8x512xi32>
    %c2146121005_i32_2 = arith.constant 2146121005 : i32
    %30 = vector.broadcast %c2146121005_i32_2 : i32 to vector<8x512xi32>
    %31 = arith.muli %29, %30 : vector<8x512xi32>
    %c15_i32_3 = arith.constant 15 : i32
    %32 = vector.broadcast %c15_i32_3 : i32 to vector<8x512xi32>
    %33 = arith.shrui %31, %32 : vector<8x512xi32>
    %34 = arith.xori %31, %33 : vector<8x512xi32>
    %c-2073254261_i32_4 = arith.constant -2073254261 : i32
    %35 = vector.broadcast %c-2073254261_i32_4 : i32 to vector<8x512xi32>
    %36 = arith.muli %34, %35 : vector<8x512xi32>
    %c16_i32_5 = arith.constant 16 : i32
    %37 = vector.broadcast %c16_i32_5 : i32 to vector<8x512xi32>
    %38 = arith.shrui %36, %37 : vector<8x512xi32>
    %39 = arith.xori %36, %38 : vector<8x512xi32>
    %c8_i32 = arith.constant 8 : i32
    %40 = vector.broadcast %c8_i32 : i32 to vector<8x512xi32>
    %41 = arith.shrui %24, %40 : vector<8x512xi32>
    %42 = arith.sitofp %41 : vector<8x512xi32> to vector<8x512xf32>
    %cst = arith.constant 5.000000e-01 : f32
    %43 = vector.broadcast %cst : f32 to vector<8x512xf32>
    %44 = arith.addf %42, %43 : vector<8x512xf32>
    %cst_6 = arith.constant 5.96046448E-8 : f32
    %45 = vector.broadcast %cst_6 : f32 to vector<8x512xf32>
    %46 = arith.mulf %44, %45 : vector<8x512xf32>
    %c8_i32_7 = arith.constant 8 : i32
    %47 = vector.broadcast %c8_i32_7 : i32 to vector<8x512xi32>
    %48 = arith.shrui %39, %47 : vector<8x512xi32>
    %49 = arith.sitofp %48 : vector<8x512xi32> to vector<8x512xf32>
    %cst_8 = arith.constant 5.96046448E-8 : f32
    %50 = vector.broadcast %cst_8 : f32 to vector<8x512xf32>
    %51 = arith.mulf %49, %50 : vector<8x512xf32>
    %52 = math.log %46 : vector<8x512xf32>
    %cst_9 = arith.constant -2.000000e+00 : f32
    %53 = vector.broadcast %cst_9 : f32 to vector<8x512xf32>
    %54 = arith.mulf %53, %52 : vector<8x512xf32>
    %55 = math.sqrt %54 : vector<8x512xf32>
    %cst_10 = arith.constant 6.28318548 : f32
    %56 = vector.broadcast %cst_10 : f32 to vector<8x512xf32>
    %57 = arith.mulf %56, %51 : vector<8x512xf32>
    %58 = math.cos %57 : vector<8x512xf32>
    %59 = arith.mulf %55, %58 : vector<8x512xf32>
    %c0_11 = arith.constant 0 : index
    %c0_12 = arith.constant 0 : index
    %60 = vector.load %arg2[%c0_11, %c0_12] : memref<16x512xf32, #tpu.memory_space<vmem>>, vector<8x512xf32>
    tpu.vector_store %arg2[%c0_11, %c0_12], %59 {strides = array<i32>} : memref<16x512xf32, #tpu.memory_space<vmem>>, vector<8x512xf32>,
    %61 = math.sin %57 : vector<8x512xf32>
    %62 = arith.mulf %55, %61 : vector<8x512xf32>
    %c8 = arith.constant 8 : index
    %c0_13 = arith.constant 0 : index
    %63 = vector.load %arg2[%c8, %c0_13] : memref<16x512xf32, #tpu.memory_space<vmem>>, vector<8x512xf32>
    tpu.vector_store %arg2[%c8, %c0_13], %62 {strides = array<i32>} : memref<16x512xf32, #tpu.memory_space<vmem>>, vector<8x512xf32>,
    return
  }
  func.func @transform_0(%arg0: i32, %arg1: memref<1xi32, #tpu.memory_space<smem>>) -> (i32, i32) {
    %c0_i32 = arith.constant 0 : i32
    %c0_i32_0 = arith.constant 0 : i32
    return %arg0, %c0_i32 : i32, i32
  }
}

</mosaic_0001>

<llo_original>
// kernel: tpu_custom_call.1
$region0: #{tpu_custom_call.1}
  #allocation0 [shape = 'u32[]', space=smem, size = 0x4, offset = 0x4, fixed_abs, tag = 'smem constant byte address 0x4 - core index']
  #allocation1 [shape = 'u32[144,128]{1,0:T(1,128)}', space=vmem, size = 0x12000, scoped, tag = 'internal scratch']
  #allocation2 [shape = 's32[1]{0}', space=sflag, size = 0x4, scoped, tag = 'scoped memory for tpu_custom_call.1']
  #allocation3 [shape = 's32[1]{0:T(128)S(6)}', space=smem, size = 0x200, scoped, tag = 'prefetched SMEM operand 0']
  %s0 = inlined_call_operand.<no memory space> [shape: s32[1], index: 0, kind: input, shape index: {}]
  %s1 = inlined_call_operand.hbm [shape: f32[16,512], index: 1, kind: output, shape index: {}]
  %s2 = sld [smem:[#allocation0]]
  $region10: #{tpu_custom_call.1} parent=0
    _
  %s4 = ssub.s32 1, %s2
  %s5 = scalar_select 0, %s4, %s2
  %6 = sst [smem:[#allocation3]] %s0
  $region1: #{tpu_custom_call.1} parent=0
    #allocation4 [shape = 'u8[32768]{0}', space=vmem, size = 0x8000, scoped, tag = 'output window, operand 0, single buffered']
    #allocation5 [shape = 's32[1]{0}', space=sflag, size = 0x4, scoped, tag = 'scoped memory for tpu_custom_call.1']
    %7 = vsyncpa [#allocation5], 0
    %v8 = vlaneseq
    %v9 = vshrl.u32 %v8, 7
    %v10 = vlaneseq
    %v11 = vand.u32 %v10, 127
    %v12 = vadd.s32 %v11, 128
    %v13 = vadd.s32 %v11, 256
    %v14 = vadd.s32 %v11, 384
    %v15 = vmul.u32 %v9, 512
    %v16 = vadd.s32 %v15, %v11
    %v17 = vadd.s32 %v15, %v12
    %v18 = vadd.s32 %v15, %v13
    %v19 = vadd.s32 %v15, %v14
    %s20 = smul.u32 0, 4096
    %v21 = vstv %s20
    %v22 = vadd.s32 %v21, %v16
    %v23 = vadd.s32 %v21, %v17
    %v24 = vadd.s32 %v21, %v18
    %v25 = vadd.s32 %v21, %v19
    %s26 = sld [smem:[#allocation3]]
    %s27 = smul.u32 %s26, 2654435769
    %v28 = vstv %s27
    %v29 = vadd.s32 %v22, %v28
    %v30 = vadd.s32 %v23, %v28
    %v31 = vadd.s32 %v24, %v28
    %v32 = vadd.s32 %v25, %v28
    %v33 = vshrl.u32 %v29, 16
    %v34 = vshrl.u32 %v30, 16
    %v35 = vshrl.u32 %v31, 16
    %v36 = vshrl.u32 %v32, 16
    %v37 = vxor.u32 %v29, %v33
    %v38 = vxor.u32 %v30, %v34
    %v39 = vxor.u32 %v31, %v35
    %v40 = vxor.u32 %v32, %v36
    %v41 = vmul.u32 %v37, 2146121005
    %v42 = vmul.u32 %v38, 2146121005
    %v43 = vmul.u32 %v39, 2146121005
    %v44 = vmul.u32 %v40, 2146121005
    %v45 = vshrl.u32 %v41, 15
    %v46 = vshrl.u32 %v42, 15
    %v47 = vshrl.u32 %v43, 15
    %v48 = vshrl.u32 %v44, 15
    %v49 = vxor.u32 %v41, %v45
    %v50 = vxor.u32 %v42, %v46
    %v51 = vxor.u32 %v43, %v47
    %v52 = vxor.u32 %v44, %v48
    %v53 = vmul.u32 %v49, 2221713035
    %v54 = vmul.u32 %v50, 2221713035
    %v55 = vmul.u32 %v51, 2221713035
    %v56 = vmul.u32 %v52, 2221713035
    %v57 = vshrl.u32 %v53, 16
    %v58 = vshrl.u32 %v54, 16
    %v59 = vshrl.u32 %v55, 16
    %v60 = vshrl.u32 %v56, 16
    %v61 = vxor.u32 %v53, %v57
    %v62 = vxor.u32 %v54, %v58
    %v63 = vxor.u32 %v55, %v59
    %v64 = vxor.u32 %v56, %v60
    %v65 = vxor.u32 %v29, 2246822507
    %v66 = vxor.u32 %v30, 2246822507
    %v67 = vxor.u32 %v31, 2246822507
    %v68 = vxor.u32 %v32, 2246822507
    %v69 = vshrl.u32 %v65, 16
    %v70 = vshrl.u32 %v66, 16
    %v71 = vshrl.u32 %v67, 16
    %v72 = vshrl.u32 %v68, 16
    %v73 = vxor.u32 %v65, %v69
    %v74 = vxor.u32 %v66, %v70
    %v75 = vxor.u32 %v67, %v71
    %v76 = vxor.u32 %v68, %v72
    %v77 = vmul.u32 %v73, 2146121005
    %v78 = vmul.u32 %v74, 2146121005
    %v79 = vmul.u32 %v75, 2146121005
    %v80 = vmul.u32 %v76, 2146121005
    %v81 = vshrl.u32 %v77, 15
    %v82 = vshrl.u32 %v78, 15
    %v83 = vshrl.u32 %v79, 15
    %v84 = vshrl.u32 %v80, 15
    %v85 = vxor.u32 %v77, %v81
    %v86 = vxor.u32 %v78, %v82
    %v87 = vxor.u32 %v79, %v83
    %v88 = vxor.u32 %v80, %v84
    %v89 = vmul.u32 %v85, 2221713035
    %v90 = vmul.u32 %v86, 2221713035
    %v91 = vmul.u32 %v87, 2221713035
    %v92 = vmul.u32 %v88, 2221713035
    %v93 = vshrl.u32 %v89, 16
    %v94 = vshrl.u32 %v90, 16
    %v95 = vshrl.u32 %v91, 16
    %v96 = vshrl.u32 %v92, 16
    %v97 = vxor.u32 %v89, %v93
    %v98 = vxor.u32 %v90, %v94
    %v99 = vxor.u32 %v91, %v95
    %v100 = vxor.u32 %v92, %v96
    %v101 = vshrl.u32 %v61, 8
    %v102 = vshrl.u32 %v62, 8
    %v103 = vshrl.u32 %v63, 8
    %v104 = vshrl.u32 %v64, 8
    %v105 = vcvt.s32.f32 %v101
    %v106 = vcvt.s32.f32 %v102
    %v107 = vcvt.s32.f32 %v103
    %v108 = vcvt.s32.f32 %v104
    %v109 = vadd.f32 %v105, 0.5
    %v110 = vadd.f32 %v106, 0.5
    %v111 = vadd.f32 %v107, 0.5
    %v112 = vadd.f32 %v108, 0.5
    %v113 = vmul.f32 %v109, 5.9604645e-08
    %v114 = vmul.f32 %v110, 5.9604645e-08
    %v115 = vmul.f32 %v111, 5.9604645e-08
    %v116 = vmul.f32 %v112, 5.9604645e-08
    %v117 = vshrl.u32 %v97, 8
    %v118 = vshrl.u32 %v98, 8
    %v119 = vshrl.u32 %v99, 8
    %v120 = vshrl.u32 %v100, 8
    %v121 = vcvt.s32.f32 %v117
    %v122 = vcvt.s32.f32 %v118
    %v123 = vcvt.s32.f32 %v119
    %v124 = vcvt.s32.f32 %v120
    %v125 = vmul.f32 %v121, 5.9604645e-08
    %v126 = vmul.f32 %v122, 5.9604645e-08
    %v127 = vmul.f32 %v123, 5.9604645e-08
    %v128 = vmul.f32 %v124, 5.9604645e-08
    %v129 = vlog2.pop %v113
    %v130 = vmul.f32 %v129, 0.6931472
    %v131 = vlog2.pop %v114
    %v132 = vmul.f32 %v131, 0.6931472
    %v133 = vlog2.pop %v115
    %v134 = vmul.f32 %v133, 0.6931472
    %v135 = vlog2.pop %v116
    %v136 = vmul.f32 %v135, 0.6931472
    %v137 = vmul.f32 %v130, -2.0
    %v138 = vmul.f32 %v132, -2.0
    %v139 = vmul.f32 %v134, -2.0
    %v140 = vmul.f32 %v136, -2.0
    %v141 = vrsqrt.pop %v137
    %v142 = vmul.f32 %v137, %v141
    %vm143 = vcmp.eq.f32.partialorder %v137, inf
    %v144 = vsel %vm143, %v137, %v142
    %vm145 = vcmp.eq.f32.partialorder %v137, 0.0
    %v146 = vand.u32 %v137, 2147483648
    %v147 = vsel %vm145, %v146, %v144
    %v148 = vrsqrt.pop %v138
    %v149 = vmul.f32 %v138, %v148
    %vm150 = vcmp.eq.f32.partialorder %v138, inf
    %v151 = vsel %vm150, %v138, %v149
    %vm152 = vcmp.eq.f32.partialorder %v138, 0.0
    %v153 = vand.u32 %v138, 2147483648
    %v154 = vsel %vm152, %v153, %v151
    %v155 = vrsqrt.pop %v139
    %v156 = vmul.f32 %v139, %v155
    %vm157 = vcmp.eq.f32.partialorder %v139, inf
    %v158 = vsel %vm157, %v139, %v156
    %vm159 = vcmp.eq.f32.partialorder %v139, 0.0
    %v160 = vand.u32 %v139, 2147483648
    %v161 = vsel %vm159, %v160, %v158
    %v162 = vrsqrt.pop %v140
    %v163 = vmul.f32 %v140, %v162
    %vm164 = vcmp.eq.f32.partialorder %v140, inf
    %v165 = vsel %vm164, %v140, %v163
    %vm166 = vcmp.eq.f32.partialorder %v140, 0.0
    %v167 = vand.u32 %v140, 2147483648
    %v168 = vsel %vm166, %v167, %v165
    %v169 = vmul.f32 %v125, 6.2831855
    %v170 = vmul.f32 %v126, 6.2831855
    %v171 = vmul.f32 %v127, 6.2831855
    %v172 = vmul.f32 %v128, 6.2831855
    %v173 = vand.u32 2147483647, %v169
    %vm174 = vcmp.le.f32.partialorder %v173, 0.7853982
    %vm175 = vcmp.lt.s32.totalorder %v169, 0
    %v176 = vand.u32 %v169, 2139095040
    %v177 = vshrl.u32 %v176, 23
    %v178 = vsub.s32 %v177, 127
    %v179 = vand.u32 2147483647, %v169
    %v180 = vand.u32 %v179, 8388607
    %v181 = vor.u32 %v180, 8388608
    %v182 = vsub.s32 0, %v181
    %v183 = vadd.s32 %v178, 1
    %vm184 = vcmp.gt.s32.totalorder %v183, 0
    %v185 = vsel %vm184, %v183, 0
    %v186 = vshrl.u32 %v185, 5
    %v187 = vand.u32 %v185, 31
    %v188 = vsub.s32 32, %v187
    %v189 = vshrl.u32 683565275, %v188
    %v190 = vshll.u32 683565275, %v187
    %v191 = vshrl.u32 2475754826, %v188
    %v192 = vor.u32 %v190, %v191
    %v193 = vshll.u32 2475754826, %v187
    %v194 = vshrl.u32 2131351028, %v188
    %v195 = vor.u32 %v193, %v194
    %v196 = vshll.u32 2131351028, %v187
    %v197 = vshrl.u32 2102212464, %v188
    %v198 = vor.u32 %v196, %v197
    %v199 = vshll.u32 2102212464, %v187
    %v200 = vshrl.u32 920167782, %v188
    %v201 = vor.u32 %v199, %v200
    %v202 = vshll.u32 920167782, %v187
    %v203 = vshrl.u32 1326507024, %v188
    %v204 = vor.u32 %v202, %v203
    %vm205 = vcmp.lt.s32.totalorder %v186, 1
    %vm206 = vcmp.lt.s32.totalorder %v186, 2
    %vm207 = vcmp.lt.s32.totalorder %v186, 3
    %vm208 = vcmp.lt.s32.totalorder %v186, 4
    %v209 = vsel %vm205, %v189, %v192
    %v210 = vsel %vm208, %v198, 2102212464
    %v211 = vsel %vm207, %v195, %v210
    %v212 = vsel %vm206, %v209, %v211
    %v213 = vsel %vm205, %v192, %v195
    %v214 = vsel %vm208, %v201, 920167782
    %v215 = vsel %vm207, %v198, %v214
    %v216 = vsel %vm206, %v213, %v215
    %v217 = vsel %vm205, %v195, %v198
    %v218 = vsel %vm208, %v204, 1326507024
    %v219 = vsel %vm207, %v201, %v218
    %v220 = vsel %vm206, %v217, %v219
    %v221 = vshll.u32 %v181, 8
    %v222 = vmul.u32.u64.compose %v221, %v220
    %v223 = vextract.low.u32 %v222
    %v224 = vextract.high.u32 %v222
    %v225 = vmul.u32.u64.compose %v221, %v216
    %v226 = vextract.low.u32 %v225
    %v227 = vextract.high.u32 %v225
    %v228 = vmul.u32 %v221, %v212
    %v229 = vadd.s32 %v224, %v226
    %vm230 = vc.u32 %v224, %v226
    %v231 = vadd.s32 %v227, 1
    %v232 = vsel %vm230, %v231, %v227
    %v233 = vadd.s32 %v228, %v232
    %v234 = vadd.s32 %v233, 536870912
    %v235 = vshrl.u32 %v234, 30
    %v236 = vshll.u32 %v235, 30
    %v237 = vsub.s32 %v233, %v236
    %vm238 = vcmp.lt.s32.totalorder %v237, 0
    %v239 = vsub.s32 0, %v237
    %v240 = vsel %vm238, %v239, %v237
    %v241 = vclz %v240
    %v242 = vsub.s32 %v241, 2
    %vm243 = vcmp.gt.s32.totalorder 0, %v242
    %v244 = vsel %vm243, 0, %v242
    %v245 = vsub.s32 32, %v244
    %v246 = vshll.u32 %v237, %v244
    %v247 = vshrl.u32 %v229, %v245
    %v248 = vor.u32 %v246, %v247
    %v249 = vsub.s32 4294967266, %v244
    %v250 = vadd.s32 %v249, 127
    %v251 = vshll.u32 %v250, 23
    %v252 = vor.u32 4788187, %v251
    %v253 = vand.u32 2147483647, %v252
    %v255 = vcvt.s32.f32 %v248
    %v256 = vmul.f32 %v255, %v253
    %v257 = vxor.u32 %v256, 2147483648
    %v258 = vsel %vm175, %v257, %v256
    %v259 = vsub.s32 4, %v235
    %v260 = vsel %vm175, %v259, %v235
    %v261 = vsel %vm174, %v169, %v258
    %v262 = vsel %vm174, 0, %v260
    %v263 = vcosq.f32.pop %v261
    %v264 = vsinq.f32.pop %v261
    %vm265 = vweird.f32 %v169
    %v266 = vand.u32 %v262, 3
    %vm267 = vcmp.lt.s32.totalorder %v266, 2
    %vm268 = vcmp.eq.s32.totalorder %v266, 0
    %v269 = vxor.u32 %v264, 2147483648
    %v270 = vsel %vm268, %v263, %v269
    %vm271 = vcmp.eq.s32.totalorder %v266, 2
    %v272 = vxor.u32 %v263, 2147483648
    %v273 = vsel %vm271, %v272, %v264
    %v274 = vsel %vm267, %v270, %v273
    %v275 = vsel %vm265, nan, %v274
    %v276 = vand.u32 2147483647, %v170
    %vm277 = vcmp.le.f32.partialorder %v276, 0.7853982
    %vm278 = vcmp.lt.s32.totalorder %v170, 0
    %v279 = vand.u32 %v170, 2139095040
    %v280 = vshrl.u32 %v279, 23
    %v281 = vsub.s32 %v280, 127
    %v282 = vand.u32 2147483647, %v170
    %v283 = vand.u32 %v282, 8388607
    %v284 = vor.u32 %v283, 8388608
    %v285 = vsub.s32 0, %v284
    %v286 = vadd.s32 %v281, 1
    %vm287 = vcmp.gt.s32.totalorder %v286, 0
    %v288 = vsel %vm287, %v286, 0
    %v289 = vshrl.u32 %v288, 5
    %v290 = vand.u32 %v288, 31
    %v291 = vsub.s32 32, %v290
    %v292 = vshrl.u32 683565275, %v291
    %v293 = vshll.u32 683565275, %v290
    %v294 = vshrl.u32 2475754826, %v291
    %v295 = vor.u32 %v293, %v294
    %v296 = vshll.u32 2475754826, %v290
    %v297 = vshrl.u32 2131351028, %v291
    %v298 = vor.u32 %v296, %v297
    %v299 = vshll.u32 2131351028, %v290
    %v300 = vshrl.u32 2102212464, %v291
    %v301 = vor.u32 %v299, %v300
    %v302 = vshll.u32 2102212464, %v290
    %v303 = vshrl.u32 920167782, %v291
    %v304 = vor.u32 %v302, %v303
    %v305 = vshll.u32 920167782, %v290
    %v306 = vshrl.u32 1326507024, %v291
    %v307 = vor.u32 %v305, %v306
    %vm308 = vcmp.lt.s32.totalorder %v289, 1
    %vm309 = vcmp.lt.s32.totalorder %v289, 2
    %vm310 = vcmp.lt.s32.totalorder %v289, 3
    %vm311 = vcmp.lt.s32.totalorder %v289, 4
    %v312 = vsel %vm308, %v292, %v295
    %v313 = vsel %vm311, %v301, 2102212464
    %v314 = vsel %vm310, %v298, %v313
    %v315 = vsel %vm309, %v312, %v314
    %v316 = vsel %vm308, %v295, %v298
    %v317 = vsel %vm311, %v304, 920167782
    %v318 = vsel %vm310, %v301, %v317
    %v319 = vsel %vm309, %v316, %v318
    %v320 = vsel %vm308, %v298, %v301
    %v321 = vsel %vm311, %v307, 1326507024
    %v322 = vsel %vm310, %v304, %v321
    %v323 = vsel %vm309, %v320, %v322
    %v324 = vshll.u32 %v284, 8
    %v325 = vmul.u32.u64.compose %v324, %v323
    %v326 = vextract.low.u32 %v325
    %v327 = vextract.high.u32 %v325
    %v328 = vmul.u32.u64.compose %v324, %v319
    %v329 = vextract.low.u32 %v328
    %v330 = vextract.high.u32 %v328
    %v331 = vmul.u32 %v324, %v315
    %v332 = vadd.s32 %v327, %v329
    %vm333 = vc.u32 %v327, %v329
    %v334 = vadd.s32 %v330, 1
    %v335 = vsel %vm333, %v334, %v330
    %v336 = vadd.s32 %v331, %v335
    %v337 = vadd.s32 %v336, 536870912
    %v338 = vshrl.u32 %v337, 30
    %v339 = vshll.u32 %v338, 30
    %v340 = vsub.s32 %v336, %v339
    %vm341 = vcmp.lt.s32.totalorder %v340, 0
    %v342 = vsub.s32 0, %v340
    %v343 = vsel %vm341, %v342, %v340
    %v344 = vclz %v343
    %v345 = vsub.s32 %v344, 2
    %vm346 = vcmp.gt.s32.totalorder 0, %v345
    %v347 = vsel %vm346, 0, %v345
    %v348 = vsub.s32 32, %v347
    %v349 = vshll.u32 %v340, %v347
    %v350 = vshrl.u32 %v332, %v348
    %v351 = vor.u32 %v349, %v350
    %v352 = vsub.s32 4294967266, %v347
    %v353 = vadd.s32 %v352, 127
    %v354 = vshll.u32 %v353, 23
    %v355 = vor.u32 4788187, %v354
    %v356 = vand.u32 2147483647, %v355
    %v358 = vcvt.s32.f32 %v351
    %v359 = vmul.f32 %v358, %v356
    %v360 = vxor.u32 %v359, 2147483648
    %v361 = vsel %vm278, %v360, %v359
    %v362 = vsub.s32 4, %v338
    %v363 = vsel %vm278, %v362, %v338
    %v364 = vsel %vm277, %v170, %v361
    %v365 = vsel %vm277, 0, %v363
    %v366 = vcosq.f32.pop %v364
    %v367 = vsinq.f32.pop %v364
    %vm368 = vweird.f32 %v170
    %v369 = vand.u32 %v365, 3
    %vm370 = vcmp.lt.s32.totalorder %v369, 2
    %vm371 = vcmp.eq.s32.totalorder %v369, 0
    %v372 = vxor.u32 %v367, 2147483648
    %v373 = vsel %vm371, %v366, %v372
    %vm374 = vcmp.eq.s32.totalorder %v369, 2
    %v375 = vxor.u32 %v366, 2147483648
    %v376 = vsel %vm374, %v375, %v367
    %v377 = vsel %vm370, %v373, %v376
    %v378 = vsel %vm368, nan, %v377
    %v379 = vand.u32 2147483647, %v171
    %vm380 = vcmp.le.f32.partialorder %v379, 0.7853982
    %vm381 = vcmp.lt.s32.totalorder %v171, 0
    %v382 = vand.u32 %v171, 2139095040
    %v383 = vshrl.u32 %v382, 23
    %v384 = vsub.s32 %v383, 127
    %v385 = vand.u32 2147483647, %v171
    %v386 = vand.u32 %v385, 8388607
    %v387 = vor.u32 %v386, 8388608
    %v388 = vsub.s32 0, %v387
    %v389 = vadd.s32 %v384, 1
    %vm390 = vcmp.gt.s32.totalorder %v389, 0
    %v391 = vsel %vm390, %v389, 0
    %v392 = vshrl.u32 %v391, 5
    %v393 = vand.u32 %v391, 31
    %v394 = vsub.s32 32, %v393
    %v395 = vshrl.u32 683565275, %v394
    %v396 = vshll.u32 683565275, %v393
    %v397 = vshrl.u32 2475754826, %v394
    %v398 = vor.u32 %v396, %v397
    %v399 = vshll.u32 2475754826, %v393
    %v400 = vshrl.u32 2131351028, %v394
    %v401 = vor.u32 %v399, %v400
    %v402 = vshll.u32 2131351028, %v393
    %v403 = vshrl.u32 2102212464, %v394
    %v404 = vor.u32 %v402, %v403
    %v405 = vshll.u32 2102212464, %v393
    %v406 = vshrl.u32 920167782, %v394
    %v407 = vor.u32 %v405, %v406
    %v408 = vshll.u32 920167782, %v393
    %v409 = vshrl.u32 1326507024, %v394
    %v410 = vor.u32 %v408, %v409
    %vm411 = vcmp.lt.s32.totalorder %v392, 1
    %vm412 = vcmp.lt.s32.totalorder %v392, 2
    %vm413 = vcmp.lt.s32.totalorder %v392, 3
    %vm414 = vcmp.lt.s32.totalorder %v392, 4
    %v415 = vsel %vm411, %v395, %v398
    %v416 = vsel %vm414, %v404, 2102212464
    %v417 = vsel %vm413, %v401, %v416
    %v418 = vsel %vm412, %v415, %v417
    %v419 = vsel %vm411, %v398, %v401
    %v420 = vsel %vm414, %v407, 920167782
    %v421 = vsel %vm413, %v404, %v420
    %v422 = vsel %vm412, %v419, %v421
    %v423 = vsel %vm411, %v401, %v404
    %v424 = vsel %vm414, %v410, 1326507024
    %v425 = vsel %vm413, %v407, %v424
    %v426 = vsel %vm412, %v423, %v425
    %v427 = vshll.u32 %v387, 8
    %v428 = vmul.u32.u64.compose %v427, %v426
    %v429 = vextract.low.u32 %v428
    %v430 = vextract.high.u32 %v428
    %v431 = vmul.u32.u64.compose %v427, %v422
    %v432 = vextract.low.u32 %v431
    %v433 = vextract.high.u32 %v431
    %v434 = vmul.u32 %v427, %v418
    %v435 = vadd.s32 %v430, %v432
    %vm436 = vc.u32 %v430, %v432
    %v437 = vadd.s32 %v433, 1
    %v438 = vsel %vm436, %v437, %v433
    %v439 = vadd.s32 %v434, %v438
    %v440 = vadd.s32 %v439, 536870912
    %v441 = vshrl.u32 %v440, 30
    %v442 = vshll.u32 %v441, 30
    %v443 = vsub.s32 %v439, %v442
    %vm444 = vcmp.lt.s32.totalorder %v443, 0
    %v445 = vsub.s32 0, %v443
    %v446 = vsel %vm444, %v445, %v443
    %v447 = vclz %v446
    %v448 = vsub.s32 %v447, 2
    %vm449 = vcmp.gt.s32.totalorder 0, %v448
    %v450 = vsel %vm449, 0, %v448
    %v451 = vsub.s32 32, %v450
    %v452 = vshll.u32 %v443, %v450
    %v453 = vshrl.u32 %v435, %v451
    %v454 = vor.u32 %v452, %v453
    %v455 = vsub.s32 4294967266, %v450
    %v456 = vadd.s32 %v455, 127
    %v457 = vshll.u32 %v456, 23
    %v458 = vor.u32 4788187, %v457
    %v459 = vand.u32 2147483647, %v458
    %v461 = vcvt.s32.f32 %v454
    %v462 = vmul.f32 %v461, %v459
    %v463 = vxor.u32 %v462, 2147483648
    %v464 = vsel %vm381, %v463, %v462
    %v465 = vsub.s32 4, %v441
    %v466 = vsel %vm381, %v465, %v441
    %v467 = vsel %vm380, %v171, %v464
    %v468 = vsel %vm380, 0, %v466
    %v469 = vcosq.f32.pop %v467
    %v470 = vsinq.f32.pop %v467
    %vm471 = vweird.f32 %v171
    %v472 = vand.u32 %v468, 3
    %vm473 = vcmp.lt.s32.totalorder %v472, 2
    %vm474 = vcmp.eq.s32.totalorder %v472, 0
    %v475 = vxor.u32 %v470, 2147483648
    %v476 = vsel %vm474, %v469, %v475
    %vm477 = vcmp.eq.s32.totalorder %v472, 2
    %v478 = vxor.u32 %v469, 2147483648
    %v479 = vsel %vm477, %v478, %v470
    %v480 = vsel %vm473, %v476, %v479
    %v481 = vsel %vm471, nan, %v480
    %v482 = vand.u32 2147483647, %v172
    %vm483 = vcmp.le.f32.partialorder %v482, 0.7853982
    %vm484 = vcmp.lt.s32.totalorder %v172, 0
    %v485 = vand.u32 %v172, 2139095040
    %v486 = vshrl.u32 %v485, 23
    %v487 = vsub.s32 %v486, 127
    %v488 = vand.u32 2147483647, %v172
    %v489 = vand.u32 %v488, 8388607
    %v490 = vor.u32 %v489, 8388608
    %v491 = vsub.s32 0, %v490
    %v492 = vadd.s32 %v487, 1
    %vm493 = vcmp.gt.s32.totalorder %v492, 0
    %v494 = vsel %vm493, %v492, 0
    %v495 = vshrl.u32 %v494, 5
    %v496 = vand.u32 %v494, 31
    %v497 = vsub.s32 32, %v496
    %v498 = vshrl.u32 683565275, %v497
    %v499 = vshll.u32 683565275, %v496
    %v500 = vshrl.u32 2475754826, %v497
    %v501 = vor.u32 %v499, %v500
    %v502 = vshll.u32 2475754826, %v496
    %v503 = vshrl.u32 2131351028, %v497
    %v504 = vor.u32 %v502, %v503
    %v505 = vshll.u32 2131351028, %v496
    %v506 = vshrl.u32 2102212464, %v497
    %v507 = vor.u32 %v505, %v506
    %v508 = vshll.u32 2102212464, %v496
    %v509 = vshrl.u32 920167782, %v497
    %v510 = vor.u32 %v508, %v509
    %v511 = vshll.u32 920167782, %v496
    %v512 = vshrl.u32 1326507024, %v497
    %v513 = vor.u32 %v511, %v512
    %vm514 = vcmp.lt.s32.totalorder %v495, 1
    %vm515 = vcmp.lt.s32.totalorder %v495, 2
    %vm516 = vcmp.lt.s32.totalorder %v495, 3
    %vm517 = vcmp.lt.s32.totalorder %v495, 4
    %v518 = vsel %vm514, %v498, %v501
    %v519 = vsel %vm517, %v507, 2102212464
    %v520 = vsel %vm516, %v504, %v519
    %v521 = vsel %vm515, %v518, %v520
    %v522 = vsel %vm514, %v501, %v504
    %v523 = vsel %vm517, %v510, 920167782
    %v524 = vsel %vm516, %v507, %v523
    %v525 = vsel %vm515, %v522, %v524
    %v526 = vsel %vm514, %v504, %v507
    %v527 = vsel %vm517, %v513, 1326507024
    %v528 = vsel %vm516, %v510, %v527
    %v529 = vsel %vm515, %v526, %v528
    %v530 = vshll.u32 %v490, 8
    %v531 = vmul.u32.u64.compose %v530, %v529
    %v532 = vextract.low.u32 %v531
    %v533 = vextract.high.u32 %v531
    %v534 = vmul.u32.u64.compose %v530, %v525
    %v535 = vextract.low.u32 %v534
    %v536 = vextract.high.u32 %v534
    %v537 = vmul.u32 %v530, %v521
    %v538 = vadd.s32 %v533, %v535
    %vm539 = vc.u32 %v533, %v535
    %v540 = vadd.s32 %v536, 1
    %v541 = vsel %vm539, %v540, %v536
    %v542 = vadd.s32 %v537, %v541
    %v543 = vadd.s32 %v542, 536870912
    %v544 = vshrl.u32 %v543, 30
    %v545 = vshll.u32 %v544, 30
    %v546 = vsub.s32 %v542, %v545
    %vm547 = vcmp.lt.s32.totalorder %v546, 0
    %v548 = vsub.s32 0, %v546
    %v549 = vsel %vm547, %v548, %v546
    %v550 = vclz %v549
    %v551 = vsub.s32 %v550, 2
    %vm552 = vcmp.gt.s32.totalorder 0, %v551
    %v553 = vsel %vm552, 0, %v551
    %v554 = vsub.s32 32, %v553
    %v555 = vshll.u32 %v546, %v553
    %v556 = vshrl.u32 %v538, %v554
    %v557 = vor.u32 %v555, %v556
    %v558 = vsub.s32 4294967266, %v553
    %v559 = vadd.s32 %v558, 127
    %v560 = vshll.u32 %v559, 23
    %v561 = vor.u32 4788187, %v560
    %v562 = vand.u32 2147483647, %v561
    %v564 = vcvt.s32.f32 %v557
    %v565 = vmul.f32 %v564, %v562
    %v566 = vxor.u32 %v565, 2147483648
    %v567 = vsel %vm484, %v566, %v565
    %v568 = vsub.s32 4, %v544
    %v569 = vsel %vm484, %v568, %v544
    %v570 = vsel %vm483, %v172, %v567
    %v571 = vsel %vm483, 0, %v569
    %v572 = vcosq.f32.pop %v570
    %v573 = vsinq.f32.pop %v570
    %vm574 = vweird.f32 %v172
    %v575 = vand.u32 %v571, 3
    %vm576 = vcmp.lt.s32.totalorder %v575, 2
    %vm577 = vcmp.eq.s32.totalorder %v575, 0
    %v578 = vxor.u32 %v573, 2147483648
    %v579 = vsel %vm577, %v572, %v578
    %vm580 = vcmp.eq.s32.totalorder %v575, 2
    %v581 = vxor.u32 %v572, 2147483648
    %v582 = vsel %vm580, %v581, %v573
    %v583 = vsel %vm576, %v579, %v582
    %v584 = vsel %vm574, nan, %v583
    %v585 = vmul.f32 %v147, %v275
    %v586 = vmul.f32 %v154, %v378
    %v587 = vmul.f32 %v161, %v481
    %v588 = vmul.f32 %v168, %v584
    %589 = vst [vmem:[#allocation4] sm:$0xff] %v585
    %590 = vst [vmem:[#allocation4 + $0x8] sm:$0xff] %v586
    %591 = vst [vmem:[#allocation4 + $0x10] sm:$0xff] %v587
    %592 = vst [vmem:[#allocation4 + $0x18] sm:$0xff] %v588
    %v593 = vand.u32 2147483647, %v169
    %vm594 = vcmp.le.f32.partialorder %v593, 0.7853982
    %vm595 = vcmp.lt.s32.totalorder %v169, 0
    %v596 = vand.u32 %v169, 2139095040
    %v597 = vshrl.u32 %v596, 23
    %v598 = vsub.s32 %v597, 127
    %v599 = vand.u32 2147483647, %v169
    %v600 = vand.u32 %v599, 8388607
    %v601 = vor.u32 %v600, 8388608
    %v602 = vsub.s32 0, %v601
    %v603 = vadd.s32 %v598, 1
    %vm604 = vcmp.gt.s32.totalorder %v603, 0
    %v605 = vsel %vm604, %v603, 0
    %v606 = vshrl.u32 %v605, 5
    %v607 = vand.u32 %v605, 31
    %v608 = vsub.s32 32, %v607
    %v609 = vshrl.u32 683565275, %v608
    %v610 = vshll.u32 683565275, %v607
    %v611 = vshrl.u32 2475754826, %v608
    %v612 = vor.u32 %v610, %v611
    %v613 = vshll.u32 2475754826, %v607
    %v614 = vshrl.u32 2131351028, %v608
    %v615 = vor.u32 %v613, %v614
    %v616 = vshll.u32 2131351028, %v607
    %v617 = vshrl.u32 2102212464, %v608
    %v618 = vor.u32 %v616, %v617
    %v619 = vshll.u32 2102212464, %v607
    %v620 = vshrl.u32 920167782, %v608
    %v621 = vor.u32 %v619, %v620
    %v622 = vshll.u32 920167782, %v607
    %v623 = vshrl.u32 1326507024, %v608
    %v624 = vor.u32 %v622, %v623
    %vm625 = vcmp.lt.s32.totalorder %v606, 1
    %vm626 = vcmp.lt.s32.totalorder %v606, 2
    %vm627 = vcmp.lt.s32.totalorder %v606, 3
    %vm628 = vcmp.lt.s32.totalorder %v606, 4
    %v629 = vsel %vm625, %v609, %v612
    %v630 = vsel %vm628, %v618, 2102212464
    %v631 = vsel %vm627, %v615, %v630
    %v632 = vsel %vm626, %v629, %v631
    %v633 = vsel %vm625, %v612, %v615
    %v634 = vsel %vm628, %v621, 920167782
    %v635 = vsel %vm627, %v618, %v634
    %v636 = vsel %vm626, %v633, %v635
    %v637 = vsel %vm625, %v615, %v618
    %v638 = vsel %vm628, %v624, 1326507024
    %v639 = vsel %vm627, %v621, %v638
    %v640 = vsel %vm626, %v637, %v639
    %v641 = vshll.u32 %v601, 8
    %v642 = vmul.u32.u64.compose %v641, %v640
    %v643 = vextract.low.u32 %v642
    %v644 = vextract.high.u32 %v642
    %v645 = vmul.u32.u64.compose %v641, %v636
    %v646 = vextract.low.u32 %v645
    %v647 = vextract.high.u32 %v645
    %v648 = vmul.u32 %v641, %v632
    %v649 = vadd.s32 %v644, %v646
    %vm650 = vc.u32 %v644, %v646
    %v651 = vadd.s32 %v647, 1
    %v652 = vsel %vm650, %v651, %v647
    %v653 = vadd.s32 %v648, %v652
    %v654 = vadd.s32 %v653, 536870912
    %v655 = vshrl.u32 %v654, 30
    %v656 = vshll.u32 %v655, 30
    %v657 = vsub.s32 %v653, %v656
    %vm658 = vcmp.lt.s32.totalorder %v657, 0
    %v659 = vsub.s32 0, %v657
    %v660 = vsel %vm658, %v659, %v657
    %v661 = vclz %v660
    %v662 = vsub.s32 %v661, 2
    %vm663 = vcmp.gt.s32.totalorder 0, %v662
    %v664 = vsel %vm663, 0, %v662
    %v665 = vsub.s32 32, %v664
    %v666 = vshll.u32 %v657, %v664
    %v667 = vshrl.u32 %v649, %v665
    %v668 = vor.u32 %v666, %v667
    %v669 = vsub.s32 4294967266, %v664
    %v670 = vadd.s32 %v669, 127
    %v671 = vshll.u32 %v670, 23
    %v672 = vor.u32 4788187, %v671
    %v673 = vand.u32 2147483647, %v672
    %v675 = vcvt.s32.f32 %v668
    %v676 = vmul.f32 %v675, %v673
    %v677 = vxor.u32 %v676, 2147483648
    %v678 = vsel %vm595, %v677, %v676
    %v679 = vsub.s32 4, %v655
    %v680 = vsel %vm595, %v679, %v655
    %v681 = vsel %vm594, %v169, %v678
    %v682 = vsel %vm594, 0, %v680
    %v683 = vcosq.f32.pop %v681
    %v684 = vsinq.f32.pop %v681
    %vm685 = vweird.f32 %v169
    %v686 = vadd.s32 %v682, 3
    %v687 = vand.u32 %v686, 3
    %vm688 = vcmp.lt.s32.totalorder %v687, 2
    %vm689 = vcmp.eq.s32.totalorder %v687, 0
    %v690 = vxor.u32 %v684, 2147483648
    %v691 = vsel %vm689, %v683, %v690
    %vm692 = vcmp.eq.s32.totalorder %v687, 2
    %v693 = vxor.u32 %v683, 2147483648
    %v694 = vsel %vm692, %v693, %v684
    %v695 = vsel %vm688, %v691, %v694
    %v696 = vsel %vm685, nan, %v695
    %v697 = vand.u32 2147483647, %v170
    %vm698 = vcmp.le.f32.partialorder %v697, 0.7853982
    %vm699 = vcmp.lt.s32.totalorder %v170, 0
    %v700 = vand.u32 %v170, 2139095040
    %v701 = vshrl.u32 %v700, 23
    %v702 = vsub.s32 %v701, 127
    %v703 = vand.u32 2147483647, %v170
    %v704 = vand.u32 %v703, 8388607
    %v705 = vor.u32 %v704, 8388608
    %v706 = vsub.s32 0, %v705
    %v707 = vadd.s32 %v702, 1
    %vm708 = vcmp.gt.s32.totalorder %v707, 0
    %v709 = vsel %vm708, %v707, 0
    %v710 = vshrl.u32 %v709, 5
    %v711 = vand.u32 %v709, 31
    %v712 = vsub.s32 32, %v711
    %v713 = vshrl.u32 683565275, %v712
    %v714 = vshll.u32 683565275, %v711
    %v715 = vshrl.u32 2475754826, %v712
    %v716 = vor.u32 %v714, %v715
    %v717 = vshll.u32 2475754826, %v711
    %v718 = vshrl.u32 2131351028, %v712
    %v719 = vor.u32 %v717, %v718
    %v720 = vshll.u32 2131351028, %v711
    %v721 = vshrl.u32 2102212464, %v712
    %v722 = vor.u32 %v720, %v721
    %v723 = vshll.u32 2102212464, %v711
    %v724 = vshrl.u32 920167782, %v712
    %v725 = vor.u32 %v723, %v724
    %v726 = vshll.u32 920167782, %v711
    %v727 = vshrl.u32 1326507024, %v712
    %v728 = vor.u32 %v726, %v727
    %vm729 = vcmp.lt.s32.totalorder %v710, 1
    %vm730 = vcmp.lt.s32.totalorder %v710, 2
    %vm731 = vcmp.lt.s32.totalorder %v710, 3
    %vm732 = vcmp.lt.s32.totalorder %v710, 4
    %v733 = vsel %vm729, %v713, %v716
    %v734 = vsel %vm732, %v722, 2102212464
    %v735 = vsel %vm731, %v719, %v734
    %v736 = vsel %vm730, %v733, %v735
    %v737 = vsel %vm729, %v716, %v719
    %v738 = vsel %vm732, %v725, 920167782
    %v739 = vsel %vm731, %v722, %v738
    %v740 = vsel %vm730, %v737, %v739
    %v741 = vsel %vm729, %v719, %v722
    %v742 = vsel %vm732, %v728, 1326507024
    %v743 = vsel %vm731, %v725, %v742
    %v744 = vsel %vm730, %v741, %v743
    %v745 = vshll.u32 %v705, 8
    %v746 = vmul.u32.u64.compose %v745, %v744
    %v747 = vextract.low.u32 %v746
    %v748 = vextract.high.u32 %v746
    %v749 = vmul.u32.u64.compose %v745, %v740
    %v750 = vextract.low.u32 %v749
    %v751 = vextract.high.u32 %v749
    %v752 = vmul.u32 %v745, %v736
    %v753 = vadd.s32 %v748, %v750
    %vm754 = vc.u32 %v748, %v750
    %v755 = vadd.s32 %v751, 1
    %v756 = vsel %vm754, %v755, %v751
    %v757 = vadd.s32 %v752, %v756
    %v758 = vadd.s32 %v757, 536870912
    %v759 = vshrl.u32 %v758, 30
    %v760 = vshll.u32 %v759, 30
    %v761 = vsub.s32 %v757, %v760
    %vm762 = vcmp.lt.s32.totalorder %v761, 0
    %v763 = vsub.s32 0, %v761
    %v764 = vsel %vm762, %v763, %v761
    %v765 = vclz %v764
    %v766 = vsub.s32 %v765, 2
    %vm767 = vcmp.gt.s32.totalorder 0, %v766
    %v768 = vsel %vm767, 0, %v766
    %v769 = vsub.s32 32, %v768
    %v770 = vshll.u32 %v761, %v768
    %v771 = vshrl.u32 %v753, %v769
    %v772 = vor.u32 %v770, %v771
    %v773 = vsub.s32 4294967266, %v768
    %v774 = vadd.s32 %v773, 127
    %v775 = vshll.u32 %v774, 23
    %v776 = vor.u32 4788187, %v775
    %v777 = vand.u32 2147483647, %v776
    %v779 = vcvt.s32.f32 %v772
    %v780 = vmul.f32 %v779, %v777
    %v781 = vxor.u32 %v780, 2147483648
    %v782 = vsel %vm699, %v781, %v780
    %v783 = vsub.s32 4, %v759
    %v784 = vsel %vm699, %v783, %v759
    %v785 = vsel %vm698, %v170, %v782
    %v786 = vsel %vm698, 0, %v784
    %v787 = vcosq.f32.pop %v785
    %v788 = vsinq.f32.pop %v785
    %vm789 = vweird.f32 %v170
    %v790 = vadd.s32 %v786, 3
    %v791 = vand.u32 %v790, 3
    %vm792 = vcmp.lt.s32.totalorder %v791, 2
    %vm793 = vcmp.eq.s32.totalorder %v791, 0
    %v794 = vxor.u32 %v788, 2147483648
    %v795 = vsel %vm793, %v787, %v794
    %vm796 = vcmp.eq.s32.totalorder %v791, 2
    %v797 = vxor.u32 %v787, 2147483648
    %v798 = vsel %vm796, %v797, %v788
    %v799 = vsel %vm792, %v795, %v798
    %v800 = vsel %vm789, nan, %v799
    %v801 = vand.u32 2147483647, %v171
    %vm802 = vcmp.le.f32.partialorder %v801, 0.7853982
    %vm803 = vcmp.lt.s32.totalorder %v171, 0
    %v804 = vand.u32 %v171, 2139095040
    %v805 = vshrl.u32 %v804, 23
    %v806 = vsub.s32 %v805, 127
    %v807 = vand.u32 2147483647, %v171
    %v808 = vand.u32 %v807, 8388607
    %v809 = vor.u32 %v808, 8388608
    %v810 = vsub.s32 0, %v809
    %v811 = vadd.s32 %v806, 1
    %vm812 = vcmp.gt.s32.totalorder %v811, 0
    %v813 = vsel %vm812, %v811, 0
    %v814 = vshrl.u32 %v813, 5
    %v815 = vand.u32 %v813, 31
    %v816 = vsub.s32 32, %v815
    %v817 = vshrl.u32 683565275, %v816
    %v818 = vshll.u32 683565275, %v815
    %v819 = vshrl.u32 2475754826, %v816
    %v820 = vor.u32 %v818, %v819
    %v821 = vshll.u32 2475754826, %v815
    %v822 = vshrl.u32 2131351028, %v816
    %v823 = vor.u32 %v821, %v822
    %v824 = vshll.u32 2131351028, %v815
    %v825 = vshrl.u32 2102212464, %v816
    %v826 = vor.u32 %v824, %v825
    %v827 = vshll.u32 2102212464, %v815
    %v828 = vshrl.u32 920167782, %v816
    %v829 = vor.u32 %v827, %v828
    %v830 = vshll.u32 920167782, %v815
    %v831 = vshrl.u32 1326507024, %v816
    %v832 = vor.u32 %v830, %v831
    %vm833 = vcmp.lt.s32.totalorder %v814, 1
    %vm834 = vcmp.lt.s32.totalorder %v814, 2
    %vm835 = vcmp.lt.s32.totalorder %v814, 3
    %vm836 = vcmp.lt.s32.totalorder %v814, 4
    %v837 = vsel %vm833, %v817, %v820
    %v838 = vsel %vm836, %v826, 2102212464
    %v839 = vsel %vm835, %v823, %v838
    %v840 = vsel %vm834, %v837, %v839
    %v841 = vsel %vm833, %v820, %v823
    %v842 = vsel %vm836, %v829, 920167782
    %v843 = vsel %vm835, %v826, %v842
    %v844 = vsel %vm834, %v841, %v843
    %v845 = vsel %vm833, %v823, %v826
    %v846 = vsel %vm836, %v832, 1326507024
    %v847 = vsel %vm835, %v829, %v846
    %v848 = vsel %vm834, %v845, %v847
    %v849 = vshll.u32 %v809, 8
    %v850 = vmul.u32.u64.compose %v849, %v848
    %v851 = vextract.low.u32 %v850
    %v852 = vextract.high.u32 %v850
    %v853 = vmul.u32.u64.compose %v849, %v844
    %v854 = vextract.low.u32 %v853
    %v855 = vextract.high.u32 %v853
    %v856 = vmul.u32 %v849, %v840
    %v857 = vadd.s32 %v852, %v854
    %vm858 = vc.u32 %v852, %v854
    %v859 = vadd.s32 %v855, 1
    %v860 = vsel %vm858, %v859, %v855
    %v861 = vadd.s32 %v856, %v860
    %v862 = vadd.s32 %v861, 536870912
    %v863 = vshrl.u32 %v862, 30
    %v864 = vshll.u32 %v863, 30
    %v865 = vsub.s32 %v861, %v864
    %vm866 = vcmp.lt.s32.totalorder %v865, 0
    %v867 = vsub.s32 0, %v865
    %v868 = vsel %vm866, %v867, %v865
    %v869 = vclz %v868
    %v870 = vsub.s32 %v869, 2
    %vm871 = vcmp.gt.s32.totalorder 0, %v870
    %v872 = vsel %vm871, 0, %v870
    %v873 = vsub.s32 32, %v872
    %v874 = vshll.u32 %v865, %v872
    %v875 = vshrl.u32 %v857, %v873
    %v876 = vor.u32 %v874, %v875
    %v877 = vsub.s32 4294967266, %v872
    %v878 = vadd.s32 %v877, 127
    %v879 = vshll.u32 %v878, 23
    %v880 = vor.u32 4788187, %v879
    %v881 = vand.u32 2147483647, %v880
    %v883 = vcvt.s32.f32 %v876
    %v884 = vmul.f32 %v883, %v881
    %v885 = vxor.u32 %v884, 2147483648
    %v886 = vsel %vm803, %v885, %v884
    %v887 = vsub.s32 4, %v863
    %v888 = vsel %vm803, %v887, %v863
    %v889 = vsel %vm802, %v171, %v886
    %v890 = vsel %vm802, 0, %v888
    %v891 = vcosq.f32.pop %v889
    %v892 = vsinq.f32.pop %v889
    %vm893 = vweird.f32 %v171
    %v894 = vadd.s32 %v890, 3
    %v895 = vand.u32 %v894, 3
    %vm896 = vcmp.lt.s32.totalorder %v895, 2
    %vm897 = vcmp.eq.s32.totalorder %v895, 0
    %v898 = vxor.u32 %v892, 2147483648
    %v899 = vsel %vm897, %v891, %v898
    %vm900 = vcmp.eq.s32.totalorder %v895, 2
    %v901 = vxor.u32 %v891, 2147483648
    %v902 = vsel %vm900, %v901, %v892
    %v903 = vsel %vm896, %v899, %v902
    %v904 = vsel %vm893, nan, %v903
    %v905 = vand.u32 2147483647, %v172
    %vm906 = vcmp.le.f32.partialorder %v905, 0.7853982
    %vm907 = vcmp.lt.s32.totalorder %v172, 0
    %v908 = vand.u32 %v172, 2139095040
    %v909 = vshrl.u32 %v908, 23
    %v910 = vsub.s32 %v909, 127
    %v911 = vand.u32 2147483647, %v172
    %v912 = vand.u32 %v911, 8388607
    %v913 = vor.u32 %v912, 8388608
    %v914 = vsub.s32 0, %v913
    %v915 = vadd.s32 %v910, 1
    %vm916 = vcmp.gt.s32.totalorder %v915, 0
    %v917 = vsel %vm916, %v915, 0
    %v918 = vshrl.u32 %v917, 5
    %v919 = vand.u32 %v917, 31
    %v920 = vsub.s32 32, %v919
    %v921 = vshrl.u32 683565275, %v920
    %v922 = vshll.u32 683565275, %v919
    %v923 = vshrl.u32 2475754826, %v920
    %v924 = vor.u32 %v922, %v923
    %v925 = vshll.u32 2475754826, %v919
    %v926 = vshrl.u32 2131351028, %v920
    %v927 = vor.u32 %v925, %v926
    %v928 = vshll.u32 2131351028, %v919
    %v929 = vshrl.u32 2102212464, %v920
    %v930 = vor.u32 %v928, %v929
    %v931 = vshll.u32 2102212464, %v919
    %v932 = vshrl.u32 920167782, %v920
    %v933 = vor.u32 %v931, %v932
    %v934 = vshll.u32 920167782, %v919
    %v935 = vshrl.u32 1326507024, %v920
    %v936 = vor.u32 %v934, %v935
    %vm937 = vcmp.lt.s32.totalorder %v918, 1
    %vm938 = vcmp.lt.s32.totalorder %v918, 2
    %vm939 = vcmp.lt.s32.totalorder %v918, 3
    %vm940 = vcmp.lt.s32.totalorder %v918, 4
    %v941 = vsel %vm937, %v921, %v924
    %v942 = vsel %vm940, %v930, 2102212464
    %v943 = vsel %vm939, %v927, %v942
    %v944 = vsel %vm938, %v941, %v943
    %v945 = vsel %vm937, %v924, %v927
    %v946 = vsel %vm940, %v933, 920167782
    %v947 = vsel %vm939, %v930, %v946
    %v948 = vsel %vm938, %v945, %v947
    %v949 = vsel %vm937, %v927, %v930
    %v950 = vsel %vm940, %v936, 1326507024
    %v951 = vsel %vm939, %v933, %v950
    %v952 = vsel %vm938, %v949, %v951
    %v953 = vshll.u32 %v913, 8
    %v954 = vmul.u32.u64.compose %v953, %v952
    %v955 = vextract.low.u32 %v954
    %v956 = vextract.high.u32 %v954
    %v957 = vmul.u32.u64.compose %v953, %v948
    %v958 = vextract.low.u32 %v957
    %v959 = vextract.high.u32 %v957
    %v960 = vmul.u32 %v953, %v944
    %v961 = vadd.s32 %v956, %v958
    %vm962 = vc.u32 %v956, %v958
    %v963 = vadd.s32 %v959, 1
    %v964 = vsel %vm962, %v963, %v959
    %v965 = vadd.s32 %v960, %v964
    %v966 = vadd.s32 %v965, 536870912
    %v967 = vshrl.u32 %v966, 30
    %v968 = vshll.u32 %v967, 30
    %v969 = vsub.s32 %v965, %v968
    %vm970 = vcmp.lt.s32.totalorder %v969, 0
    %v971 = vsub.s32 0, %v969
    %v972 = vsel %vm970, %v971, %v969
    %v973 = vclz %v972
    %v974 = vsub.s32 %v973, 2
    %vm975 = vcmp.gt.s32.totalorder 0, %v974
    %v976 = vsel %vm975, 0, %v974
    %v977 = vsub.s32 32, %v976
    %v978 = vshll.u32 %v969, %v976
    %v979 = vshrl.u32 %v961, %v977
    %v980 = vor.u32 %v978, %v979
    %v981 = vsub.s32 4294967266, %v976
    %v982 = vadd.s32 %v981, 127
    %v983 = vshll.u32 %v982, 23
    %v984 = vor.u32 4788187, %v983
    %v985 = vand.u32 2147483647, %v984
    %v987 = vcvt.s32.f32 %v980
    %v988 = vmul.f32 %v987, %v985
    %v989 = vxor.u32 %v988, 2147483648
    %v990 = vsel %vm907, %v989, %v988
    %v991 = vsub.s32 4, %v967
    %v992 = vsel %vm907, %v991, %v967
    %v993 = vsel %vm906, %v172, %v990
    %v994 = vsel %vm906, 0, %v992
    %v995 = vcosq.f32.pop %v993
    %v996 = vsinq.f32.pop %v993
    %vm997 = vweird.f32 %v172
    %v998 = vadd.s32 %v994, 3
    %v999 = vand.u32 %v998, 3
    %vm1000 = vcmp.lt.s32.totalorder %v999, 2
    %vm1001 = vcmp.eq.s32.totalorder %v999, 0
    %v1002 = vxor.u32 %v996, 2147483648
    %v1003 = vsel %vm1001, %v995, %v1002
    %vm1004 = vcmp.eq.s32.totalorder %v999, 2
    %v1005 = vxor.u32 %v995, 2147483648
    %v1006 = vsel %vm1004, %v1005, %v996
    %v1007 = vsel %vm1000, %v1003, %v1006
    %v1008 = vsel %vm997, nan, %v1007
    %v1009 = vmul.f32 %v147, %v696
    %v1010 = vmul.f32 %v154, %v800
    %v1011 = vmul.f32 %v161, %v904
    %v1012 = vmul.f32 %v168, %v1008
    %1013 = vst [vmem:[#allocation4 + $0x20] sm:$0xff] %v1009
    %1014 = vst [vmem:[#allocation4 + $0x28] sm:$0xff] %v1010
    %1015 = vst [vmem:[#allocation4 + $0x30] sm:$0xff] %v1011
    %1016 = vst [vmem:[#allocation4 + $0x38] sm:$0xff] %v1012
    // Predicated region
    $region2: #{tpu_custom_call.1} parent=1 // pred_check
      _
    $region3: #{tpu_custom_call.1} parent=1 // pred_check_branch
      %1018 = sbr.rel (0) target = $region5
    $region4: #{tpu_custom_call.1} parent=1 // pred_region
      %s1020 = ssub.s32 1024, 1024
      %1021 = vsyncadd [#allocation5], %s1020
      %s1022 = sshll.u32 [#allocation4], 4
      %s1023 = int_to_ptr.vmem [resolvable:$true] %s1022
      %1028 = dma.vmem_to_hbm [thread:$0]  %s1023, 1024, %s1, [#allocation5], 512, 512, 32
    $region5: #{tpu_custom_call.1} parent=1 // pred_fallthru
      _
    // Predicated region
    $region6: #{tpu_custom_call.1} parent=1 // pred_check
      _
    $region7: #{tpu_custom_call.1} parent=1 // pred_check_branch
      %1030 = sbr.rel (0) target = $region9
    $region8: #{tpu_custom_call.1} parent=1 // pred_region
      %1031 = dma.done [#allocation5], 1024
    $region9: #{tpu_custom_call.1} parent=1 // pred_fallthru
      _
    %1032 = vsyncpa [#allocation5], 1

</llo_original>
